<compile_context>
chip_gen: v5e
topology: v5e:2x2
jax: 0.10.0
libtpu: 0.0.40
codegen_flags: <defaults>
</compile_context>

<pallas_src>
import jax
import jax.numpy as jnp
from jax.experimental import pallas as pl
from jax.experimental.pallas import tpu as pltpu


_LANE = 128


def _round_up(x, m):
    return (x + m - 1) // m * m


def _bias_mf_kernel(uf_ref, if_ref, bias_ref, o_ref):
    # uf_ref / if_ref : (F, TB) factor tiles, batch on lanes.
    # bias_ref / o_ref: (1, TB) lane-dense rows.
    # astype is a no-op for f32 tables; keeps the kernel valid if the tables
    # are stored in bf16 (useful on bandwidth-poor v5e) — accumulate in f32.
    uf = uf_ref[...].astype(jnp.float32)
    itf = if_ref[...].astype(jnp.float32)
    dot = jnp.sum(uf * itf, axis=0, keepdims=True)      # sublane reduce -> (1, TB)
    o_ref[...] = dot + bias_ref[...]


def bias_mf_forward(user_idx, item_idx, params, *, max_tile=1024):
    """forward(user, item) of BaseBiasMF: (u_f * i_f).sum(-1) + u_b + i_b."""
    uf_tbl = params["user_factor"]    # (users, F)
    if_tbl = params["item_factor"]    # (items, F)
    ub_tbl = params["user_biases"]    # (users, 1)
    ib_tbl = params["item_biases"]    # (items, 1)

    B = user_idx.shape[0]
    F = uf_tbl.shape[1]

    # Batch tile: multiple of 128 (lane width); capped so a factor tile stays
    # <= ~2 MiB (2 inputs x 2 pipeline buffers fits comfortably in VMEM on
    # every generation, incl. v7x's 64 MiB).
    tb_cap = max(_LANE, ((1 << 21) // (4 * F)) // _LANE * _LANE)
    tb = min(max_tile, tb_cap, _round_up(B, _LANE))
    b_pad = _round_up(B, tb)

    # Pad the cheap index vectors (index 0 is always valid); padded lanes are
    # sliced off at the end.
    u_idx = jnp.pad(user_idx, (0, b_pad - B))
    i_idx = jnp.pad(item_idx, (0, b_pad - B))

    # Glue: embedding row gather, then batch-on-lanes (F, B_pad) layout.
    # (Storing the tables factor-major would remove the transpose entirely.)
    uf = jnp.take(uf_tbl, u_idx, axis=0).T              # (F, B_pad)
    itf = jnp.take(if_tbl, i_idx, axis=0).T             # (F, B_pad)
    # Pre-sum the biases into one lane-dense stream.
    bias = (jnp.take(ub_tbl, u_idx, axis=0)
            + jnp.take(ib_tbl, i_idx, axis=0)).reshape(1, b_pad)
    bias = bias.astype(jnp.float32)

    grid = (b_pad // tb,)
    out = pl.pallas_call(
        _bias_mf_kernel,
        out_shape=jax.ShapeDtypeStruct((1, b_pad), jnp.float32),
        grid=grid,
        in_specs=[
            pl.BlockSpec((F, tb), lambda i: (0, i)),
            pl.BlockSpec((F, tb), lambda i: (0, i)),
            pl.BlockSpec((1, tb), lambda i: (0, i)),
        ],
        out_specs=pl.BlockSpec((1, tb), lambda i: (0, i)),
        compiler_params=pltpu.CompilerParams(
            dimension_semantics=("parallel",),     # megacore-shardable on v7x
            vmem_limit_bytes=32 * 1024 * 1024,
        ),
    )(uf, itf, bias)

    # preds.squeeze() in the PyTorch reference: -> (B,)
    return out[0, :B]


def init_params(key, users, items, factors):
    # nn.Embedding default init: N(0, 1); same layout as the PyTorch module.
    k1, k2, k3, k4 = jax.random.split(key, 4)
    return {
        "user_factor": jax.random.normal(k1, (users, factors), jnp.float32),
        "item_factor": jax.random.normal(k2, (items, factors), jnp.float32),
        "user_biases": jax.random.normal(k3, (users, 1), jnp.float32),
        "item_biases": jax.random.normal(k4, (items, 1), jnp.float32),
    }


if __name__ == "__main__":
    users, items, factors = 16, 24, 32
    batch = 8

    key = jax.random.PRNGKey(0)
    pkey, ukey, ikey = jax.random.split(key, 3)
    params = init_params(pkey, users, items, factors)

    user_idx = jax.random.randint(ukey, (batch,), 0, users, dtype=jnp.int32)
    item_idx = jax.random.randint(ikey, (batch,), 0, items, dtype=jnp.int32)

    preds = jax.jit(bias_mf_forward)(user_idx, item_idx, params)
    jax.block_until_ready(preds)

    # Pure-JAX reference (same semantics as the PyTorch forward).
    uf = jnp.take(params["user_factor"], user_idx, axis=0)
    itf = jnp.take(params["item_factor"], item_idx, axis=0)
    ub = jnp.take(params["user_biases"], user_idx, axis=0)
    ib = jnp.take(params["item_biases"], item_idx, axis=0)
    ref = jnp.squeeze((uf * itf).sum(axis=1, keepdims=True) + ub + ib, axis=-1)

    assert preds.shape == (batch,)
    assert jnp.allclose(preds, ref, atol=1e-4, rtol=1e-4)
    print("KERNEL_OK")
</pallas_src>

<mosaic_0001>
module attributes {stable_mosaic.version = 11 : i64} {
  func.func @_bias_mf_kernel(%arg0: i32, %arg1: memref<32x128xf32, #tpu.memory_space<vmem>>, %arg2: memref<32x128xf32, #tpu.memory_space<vmem>>, %arg3: memref<1x128xf32, #tpu.memory_space<vmem>>, %arg4: memref<1x128xf32, #tpu.memory_space<vmem>>) attributes {dimension_semantics = [#tpu.dimension_semantics<parallel>], iteration_bounds = array<i64: 1>, scalar_prefetch = 0 : i64, scratch_operands = 0 : i64, tpu.core_type = #tpu.core_type<tc>, window_params = [{transform_indices = @transform_0, window_bounds = array<i64: 32, 128>}, {transform_indices = @transform_1, window_bounds = array<i64: 32, 128>}, {transform_indices = @transform_2, window_bounds = array<i64: 1, 128>}, {transform_indices = @transform_3, window_bounds = array<i64: 1, 128>}]} {
    %c0 = arith.constant 0 : index
    %c0_0 = arith.constant 0 : index
    %0 = vector.load %arg1[%c0, %c0_0] : memref<32x128xf32, #tpu.memory_space<vmem>>, vector<32x128xf32>
    %c0_1 = arith.constant 0 : index
    %c0_2 = arith.constant 0 : index
    %1 = vector.load %arg2[%c0_1, %c0_2] : memref<32x128xf32, #tpu.memory_space<vmem>>, vector<32x128xf32>
    %2 = arith.mulf %0, %1 : vector<32x128xf32>
    %cst = arith.constant dense<0.000000e+00> : vector<128xf32>
    %3 = vector.multi_reduction <add>, %2, %cst [0] : vector<32x128xf32> to vector<128xf32>
    %4 = vector.shape_cast %3 : vector<128xf32> to vector<1x128xf32>
    %c0_3 = arith.constant 0 : index
    %c0_4 = arith.constant 0 : index
    %5 = vector.load %arg3[%c0_3, %c0_4] : memref<1x128xf32, #tpu.memory_space<vmem>>, vector<1x128xf32>
    %6 = arith.addf %4, %5 : vector<1x128xf32>
    %c0_5 = arith.constant 0 : index
    %c0_6 = arith.constant 0 : index
    %7 = vector.load %arg4[%c0_5, %c0_6] : memref<1x128xf32, #tpu.memory_space<vmem>>, vector<1x128xf32>
    tpu.vector_store %arg4[%c0_5, %c0_6], %6 {strides = array<i32>} : memref<1x128xf32, #tpu.memory_space<vmem>>, vector<1x128xf32>,
    return
  }
  func.func @transform_0(%arg0: i32) -> (i32, i32) {
    %c0_i32 = arith.constant 0 : i32
    %c0_i32_0 = arith.constant 0 : i32
    return %c0_i32, %arg0 : i32, i32
  }
  func.func @transform_1(%arg0: i32) -> (i32, i32) {
    %c0_i32 = arith.constant 0 : i32
    %c0_i32_0 = arith.constant 0 : i32
    return %c0_i32, %arg0 : i32, i32
  }
  func.func @transform_2(%arg0: i32) -> (i32, i32) {
    %c0_i32 = arith.constant 0 : i32
    %c0_i32_0 = arith.constant 0 : i32
    return %c0_i32, %arg0 : i32, i32
  }
  func.func @transform_3(%arg0: i32) -> (i32, i32) {
    %c0_i32 = arith.constant 0 : i32
    %c0_i32_0 = arith.constant 0 : i32
    return %c0_i32, %arg0 : i32, i32
  }
}

</mosaic_0001>

<llo_original>
// kernel: bias_mf_forward.1
$region0: #{bias_mf_forward.1}
  #allocation0 [shape = 'u32[]', space=smem, size = 0x4, offset = 0x4, fixed_abs, tag = 'smem constant byte address 0x4 - core index']
  #allocation1 [shape = 'u32[72,128]{1,0:T(1,128)}', space=vmem, size = 0x9000, scoped, tag = 'internal scratch']
  %s0 = inlined_call_operand.vmem [shape: f32[32,128], index: 0, kind: input, shape index: {}]
  %s1 = inlined_call_operand.vmem [shape: f32[32,128], index: 1, kind: input, shape index: {}]
  %s2 = inlined_call_operand.vmem [shape: f32[1,128], index: 2, kind: input, shape index: {}]
  %s3 = inlined_call_operand.vmem [shape: f32[1,128], index: 3, kind: output, shape index: {}]
  %s4 = sld [smem:[#allocation0]]
  $region22: #{bias_mf_forward.1} parent=0
    _
  %s6 = ssub.s32 1, %s4
  %s7 = scalar_select 0, %s6, %s4
  // Predicated region
  $region2: #{bias_mf_forward.1} parent=0 // pred_check
    _
  $region3: #{bias_mf_forward.1} parent=0 // pred_check_branch
    %9 = sbr.rel (0) target = $region5
  $region4: #{bias_mf_forward.1} parent=0 // pred_region
    _
  $region5: #{bias_mf_forward.1} parent=0 // pred_fallthru
    _
  // Predicated region
  $region6: #{bias_mf_forward.1} parent=0 // pred_check
    _
  $region7: #{bias_mf_forward.1} parent=0 // pred_check_branch
    %11 = sbr.rel (0) target = $region9
  $region8: #{bias_mf_forward.1} parent=0 // pred_region
    _
  $region9: #{bias_mf_forward.1} parent=0 // pred_fallthru
    _
  // Predicated region
  $region10: #{bias_mf_forward.1} parent=0 // pred_check
    _
  $region11: #{bias_mf_forward.1} parent=0 // pred_check_branch
    %13 = sbr.rel (0) target = $region13
  $region12: #{bias_mf_forward.1} parent=0 // pred_region
    _
  $region13: #{bias_mf_forward.1} parent=0 // pred_fallthru
    _
  %v14 = vld [vmem:[%s0] sm:$0xff]
  %v15 = vld [vmem:[%s0 + $0x8] sm:$0xff]
  %v16 = vld [vmem:[%s0 + $0x10] sm:$0xff]
  %v17 = vld [vmem:[%s0 + $0x18] sm:$0xff]
  %v18 = vld [vmem:[%s1] sm:$0xff]
  %v19 = vld [vmem:[%s1 + $0x8] sm:$0xff]
  %v20 = vld [vmem:[%s1 + $0x10] sm:$0xff]
  %v21 = vld [vmem:[%s1 + $0x18] sm:$0xff]
  %v22 = vmul.f32 %v14, %v18
  %v23 = vmul.f32 %v15, %v19
  %v24 = vmul.f32 %v16, %v20
  %v25 = vmul.f32 %v17, %v21
  %v26 = vadd.f32 %v22, %v23
  %v27 = vadd.f32 %v26, %v24
  %v28 = vadd.f32 %v27, %v25
  %v29 = vrot.slane %v28, 4
  %v30 = vadd.f32 %v28, %v29
  %v31 = vrot.slane %v30, 2
  %v32 = vadd.f32 %v30, %v31
  %v33 = vrot.slane %v32, 1
  %v34 = vadd.f32 %v32, %v33
  %v35 = vld [vmem:[%s2] sm:$0x1]
  %v36 = vadd.f32 %v34, %v35
  %37 = vst [vmem:[%s3] sm:$0x1] %v36
  // Predicated region
  $region14: #{bias_mf_forward.1} parent=0 // pred_check
    _
  $region15: #{bias_mf_forward.1} parent=0 // pred_check_branch
    %39 = sbr.rel (0) target = $region17
  $region16: #{bias_mf_forward.1} parent=0 // pred_region
    _
  $region17: #{bias_mf_forward.1} parent=0 // pred_fallthru
    _
  // Predicated region
  $region18: #{bias_mf_forward.1} parent=0 // pred_check
    _
  $region19: #{bias_mf_forward.1} parent=0 // pred_check_branch
    %41 = sbr.rel (0) target = $region21
  $region20: #{bias_mf_forward.1} parent=0 // pred_region
    _
  $region21: #{bias_mf_forward.1} parent=0 // pred_fallthru
    _

</llo_original>
